<compile_context>
chip_gen: v5e
topology: v5e:2x2
jax: 0.10.0
libtpu: 0.0.40
codegen_flags: <defaults>
</compile_context>

<pallas_src>
import jax
import jax.numpy as jnp
from jax.experimental import pallas as pl
from jax.experimental.pallas import tpu as pltpu

_LANE = 128
_SUBLANE = 8


def _round_up(x, m):
    return ((x + m - 1) // m) * m


def _nbytes(a):
    return a.size * a.dtype.itemsize


def _vmem_capacity_bytes():
    """Physical VMEM of the current part (fallback: v7x's 64 MiB)."""
    try:
        return int(pltpu.get_tpu_info().vmem_capacity_bytes)
    except Exception:
        return 64 * (1 << 20)


def encoder_kernel(x_ref, w1_ref, b1_ref, w2_ref, b2_ref, w3_ref, b3_ref, z_ref):
    """One batch tile of the 3-layer MLP encoder.

    Weights are pre-transposed to (in, out) and zero-padded to lane-dense
    feature dims, so each layer is a plain `h @ W` on the MXU with f32
    accumulation; bias-add + ReLU run on the f32 accumulator.
    """
    # Layer 1: Linear(in -> h1_p) + ReLU
    h = jnp.dot(x_ref[...].astype(w1_ref.dtype), w1_ref[...],
                preferred_element_type=jnp.float32)
    h = jnp.maximum(h + b1_ref[...], 0.0)

    # Layer 2: Linear(h1_p -> h2_p) + ReLU
    h = jnp.dot(h.astype(w2_ref.dtype), w2_ref[...],
                preferred_element_type=jnp.float32)
    h = jnp.maximum(h + b2_ref[...], 0.0)

    # Layer 3: Linear(h2_p -> latent_p) + ReLU
    h = jnp.dot(h.astype(w3_ref.dtype), w3_ref[...],
                preferred_element_type=jnp.float32)
    z_ref[...] = jnp.maximum(h + b3_ref[...], 0.0).astype(z_ref.dtype)


def prepare_params(params, compute_dtype=jnp.float32):
    """One-time parameter prep (do this once, NOT per forward call).

    - Transposes PyTorch (out, in) weights to (in, out) so the kernel feeds
      the MXU its natural [K, N] layout (no per-step transpose).
    - Zero-pads every layer's output features (and the matching input rows of
      the next layer) up to 128-lane multiples: lane-dense intermediates and
      stores, exact through bias + ReLU.
    - Optionally casts weights to bf16 (halves weight HBM/VMEM); biases stay
      f32 (added onto the f32 accumulator).
    """
    (w1, b1), (w2, b2), (w3, b3) = params["l1"], params["l2"], params["l3"]
    h1, h2, latent = w1.shape[0], w2.shape[0], w3.shape[0]
    h1p = _round_up(max(h1, 1), _LANE)
    h2p = _round_up(max(h2, 1), _LANE)
    lp = _round_up(max(latent, 1), _LANE)

    w1t = jnp.pad(w1.T, ((0, 0), (0, h1p - h1)))            # (in,    h1_p)
    w2t = jnp.pad(w2.T, ((0, h1p - h1), (0, h2p - h2)))     # (h1_p,  h2_p)
    w3t = jnp.pad(w3.T, ((0, h2p - h2), (0, lp - latent)))  # (h2_p,  lat_p)

    return {
        "w1": w1t.astype(compute_dtype), "b1": jnp.pad(b1, (0, h1p - h1))[None, :].astype(jnp.float32),
        "w2": w2t.astype(compute_dtype), "b2": jnp.pad(b2, (0, h2p - h2))[None, :].astype(jnp.float32),
        "w3": w3t.astype(compute_dtype), "b3": jnp.pad(b3, (0, lp - latent))[None, :].astype(jnp.float32),
        "latent": latent,
    }


def encoder_forward(x, prep, *, tb=512, out_dtype=jnp.float32):
    """x: [B, in_size] float32. prep: output of prepare_params."""
    B, in_size = x.shape
    w1, b1 = prep["w1"], prep["b1"]
    w2, b2 = prep["w2"], prep["b2"]
    w3, b3 = prep["w3"], prep["b3"]
    latent = prep["latent"]
    h1p, h2p, latent_p = w1.shape[1], w2.shape[1], w3.shape[1]
    out_itemsize = jnp.dtype(out_dtype).itemsize

    # Batch tile: multiple of 8 sublanes, no larger than the (rounded) batch.
    tb = max(_SUBLANE, min(_round_up(tb, _SUBLANE), _round_up(B, _SUBLANE)))

    weight_bytes = sum(_nbytes(a) for a in (w1, b1, w2, b2, w3, b3))

    def footprint(tb_):
        # weights single-buffered + triple-buffered x/z tiles + f32 live intermediates
        xz = 3 * tb_ * (in_size * x.dtype.itemsize + latent_p * out_itemsize)
        live = 4 * tb_ * (h1p + h2p + latent_p)
        return weight_bytes + xz + live

    vmem_cap = _vmem_capacity_bytes()
    budget = int(0.85 * vmem_cap)          # headroom for compiler internal scratch
    while tb > _SUBLANE and footprint(tb) > budget:
        tb = max(_SUBLANE, tb // 2)

    grid = (pl.cdiv(B, tb),)               # ragged last block handled by Pallas

    # Always set an explicit scoped-VMEM limit (per-generation aware).
    vmem_limit = int(min(max(2 * footprint(tb), 32 << 20), budget))

    flops = 2 * B * (in_size * h1p + h1p * h2p + h2p * latent_p)
    bytes_accessed = _nbytes(x) + weight_bytes + B * latent_p * out_itemsize
    cost = pl.CostEstimate(flops=flops, transcendentals=0,
                           bytes_accessed=bytes_accessed)

    compiler_params = pltpu.CompilerParams(
        dimension_semantics=("parallel",),  # shard batch tiles across TCs (v7x)
        vmem_limit_bytes=vmem_limit,
    )

    def make_specs(opt):
        wmode = pl.Buffered(1) if opt else None  # resident weights: 1 buffer
        xmode = pl.Buffered(3) if opt else None  # streamed x/z: 3-deep

        def const_spec(a):
            return pl.BlockSpec(a.shape, lambda i: (0, 0), pipeline_mode=wmode)

        in_specs = [
            pl.BlockSpec((tb, in_size), lambda i: (i, 0), pipeline_mode=xmode),
            const_spec(w1), const_spec(b1),
            const_spec(w2), const_spec(b2),
            const_spec(w3), const_spec(b3),
        ]
        out_spec = pl.BlockSpec((tb, latent_p), lambda i: (i, 0),
                                pipeline_mode=xmode)
        return in_specs, out_spec

    def run(opt):
        in_specs, out_spec = make_specs(opt)
        return pl.pallas_call(
            encoder_kernel,
            out_shape=jax.ShapeDtypeStruct((B, latent_p), out_dtype),
            grid=grid,
            in_specs=in_specs,
            out_specs=out_spec,
            compiler_params=compiler_params,
            cost_estimate=cost,
        )(x, w1, b1, w2, b2, w3, b3)

    try:
        z_p = run(True)
    except Exception:
        # Fallback: default (double-buffered) pipelining if the explicit
        # buffer-count hints are not supported by this jax/Mosaic version.
        z_p = run(False)

    return z_p[:, :latent]


def init_params(key, in_size, latent_size):
    """Deterministic init mimicking nn.Linear default (uniform +/- 1/sqrt(fan_in))."""
    dims = [(in_size, in_size // 2),
            (in_size // 2, in_size // 4),
            (in_size // 4, latent_size)]
    params = {}
    for name, (fan_in, fan_out) in zip(["l1", "l2", "l3"], dims):
        key, kw, kb = jax.random.split(key, 3)
        bound = 1.0 / (fan_in ** 0.5)
        w = jax.random.uniform(kw, (fan_out, fan_in), jnp.float32, -bound, bound)
        b = jax.random.uniform(kb, (fan_out,), jnp.float32, -bound, bound)
        params[name] = (w, b)
    return params


def reference_forward(x, params):
    (w1, b1), (w2, b2), (w3, b3) = params["l1"], params["l2"], params["l3"]
    h = jnp.maximum(x @ w1.T + b1, 0.0)
    h = jnp.maximum(h @ w2.T + b2, 0.0)
    return jnp.maximum(h @ w3.T + b3, 0.0)


if __name__ == "__main__":
    B, in_size, latent_size = 64, 32, 8
    key = jax.random.PRNGKey(0)
    key, kx = jax.random.split(key)
    x = jax.random.normal(kx, (B, in_size), jnp.float32)
    params = init_params(key, in_size, latent_size)
    z_ref = reference_forward(x, params)

    # f32 weight path: exact vs reference; tb=16 -> 4 pipelined batch tiles.
    prep_f32 = prepare_params(params, jnp.float32)
    z = encoder_forward(x, prep_f32, tb=16)
    jax.block_until_ready(z)
    assert z.shape == (B, latent_size)
    assert jnp.allclose(z, z_ref, atol=1e-5, rtol=1e-5)

    # bf16 weight path: halves weight HBM traffic, MXU-native bf16 (f32 accum).
    prep_bf16 = prepare_params(params, jnp.bfloat16)
    z16 = encoder_forward(x, prep_bf16, tb=16)
    jax.block_until_ready(z16)
    assert z16.shape == (B, latent_size)
    assert jnp.allclose(z16, z_ref, atol=1e-1, rtol=1e-1)

    print("KERNEL_OK")
</pallas_src>

<mosaic_0001>
module attributes {stable_mosaic.version = 11 : i64} {
  func.func @encoder_kernel(%arg0: i32, %arg1: memref<16x32xf32, #tpu.memory_space<vmem>>, %arg2: memref<32x128xf32, #tpu.memory_space<vmem>>, %arg3: memref<1x128xf32, #tpu.memory_space<vmem>>, %arg4: memref<128x128xf32, #tpu.memory_space<vmem>>, %arg5: memref<1x128xf32, #tpu.memory_space<vmem>>, %arg6: memref<128x128xf32, #tpu.memory_space<vmem>>, %arg7: memref<1x128xf32, #tpu.memory_space<vmem>>, %arg8: memref<16x128xf32, #tpu.memory_space<vmem>>) attributes {dimension_semantics = [#tpu.dimension_semantics<parallel>], iteration_bounds = array<i64: 4>, scalar_prefetch = 0 : i64, scratch_operands = 0 : i64, tpu.core_type = #tpu.core_type<tc>, window_params = [{transform_indices = @transform_0, window_bounds = array<i64: 16, 32>}, {pipeline_mode = #tpu.pipeline_mode<synchronous>, transform_indices = @transform_1, window_bounds = array<i64: 32, 128>}, {pipeline_mode = #tpu.pipeline_mode<synchronous>, transform_indices = @transform_2, window_bounds = array<i64: 1, 128>}, {pipeline_mode = #tpu.pipeline_mode<synchronous>, transform_indices = @transform_3, window_bounds = array<i64: 128, 128>}, {pipeline_mode = #tpu.pipeline_mode<synchronous>, transform_indices = @transform_4, window_bounds = array<i64: 1, 128>}, {pipeline_mode = #tpu.pipeline_mode<synchronous>, transform_indices = @transform_5, window_bounds = array<i64: 128, 128>}, {pipeline_mode = #tpu.pipeline_mode<synchronous>, transform_indices = @transform_6, window_bounds = array<i64: 1, 128>}, {transform_indices = @transform_7, window_bounds = array<i64: 16, 128>}]} {
    %c0 = arith.constant 0 : index
    %c0_0 = arith.constant 0 : index
    %0 = vector.load %arg1[%c0, %c0_0] : memref<16x32xf32, #tpu.memory_space<vmem>>, vector<16x32xf32>
    %c0_1 = arith.constant 0 : index
    %c0_2 = arith.constant 0 : index
    %1 = vector.load %arg2[%c0_1, %c0_2] : memref<32x128xf32, #tpu.memory_space<vmem>>, vector<32x128xf32>
    %cst = arith.constant dense<0.000000e+00> : vector<16x128xf32>
    %2 = tpu.matmul %0, %1, %cst {dimension_numbers = #tpu.dot_dimension_numbers<[1], [0], [0], [1], [0, 0, 1, 1], [], []>} : vector<16x32xf32>, vector<32x128xf32>, vector<16x128xf32> -> vector<16x128xf32>
    %c0_3 = arith.constant 0 : index
    %c0_4 = arith.constant 0 : index
    %3 = vector.load %arg3[%c0_3, %c0_4] : memref<1x128xf32, #tpu.memory_space<vmem>>, vector<1x128xf32>
    %4 = vector.broadcast %3 : vector<1x128xf32> to vector<16x128xf32>
    %5 = arith.addf %2, %4 : vector<16x128xf32>
    %cst_5 = arith.constant 0.000000e+00 : f32
    %6 = vector.broadcast %cst_5 : f32 to vector<16x128xf32>
    %7 = arith.maximumf %5, %6 : vector<16x128xf32>
    %c0_6 = arith.constant 0 : index
    %c0_7 = arith.constant 0 : index
    %8 = vector.load %arg4[%c0_6, %c0_7] : memref<128x128xf32, #tpu.memory_space<vmem>>, vector<128x128xf32>
    %cst_8 = arith.constant dense<0.000000e+00> : vector<16x128xf32>
    %9 = tpu.matmul %7, %8, %cst_8 {dimension_numbers = #tpu.dot_dimension_numbers<[1], [0], [0], [1], [0, 0, 1, 1], [], []>} : vector<16x128xf32>, vector<128x128xf32>, vector<16x128xf32> -> vector<16x128xf32>
    %c0_9 = arith.constant 0 : index
    %c0_10 = arith.constant 0 : index
    %10 = vector.load %arg5[%c0_9, %c0_10] : memref<1x128xf32, #tpu.memory_space<vmem>>, vector<1x128xf32>
    %11 = vector.broadcast %10 : vector<1x128xf32> to vector<16x128xf32>
    %12 = arith.addf %9, %11 : vector<16x128xf32>
    %cst_11 = arith.constant 0.000000e+00 : f32
    %13 = vector.broadcast %cst_11 : f32 to vector<16x128xf32>
    %14 = arith.maximumf %12, %13 : vector<16x128xf32>
    %c0_12 = arith.constant 0 : index
    %c0_13 = arith.constant 0 : index
    %15 = vector.load %arg6[%c0_12, %c0_13] : memref<128x128xf32, #tpu.memory_space<vmem>>, vector<128x128xf32>
    %cst_14 = arith.constant dense<0.000000e+00> : vector<16x128xf32>
    %16 = tpu.matmul %14, %15, %cst_14 {dimension_numbers = #tpu.dot_dimension_numbers<[1], [0], [0], [1], [0, 0, 1, 1], [], []>} : vector<16x128xf32>, vector<128x128xf32>, vector<16x128xf32> -> vector<16x128xf32>
    %c0_15 = arith.constant 0 : index
    %c0_16 = arith.constant 0 : index
    %17 = vector.load %arg7[%c0_15, %c0_16] : memref<1x128xf32, #tpu.memory_space<vmem>>, vector<1x128xf32>
    %18 = vector.broadcast %17 : vector<1x128xf32> to vector<16x128xf32>
    %19 = arith.addf %16, %18 : vector<16x128xf32>
    %cst_17 = arith.constant 0.000000e+00 : f32
    %20 = vector.broadcast %cst_17 : f32 to vector<16x128xf32>
    %21 = arith.maximumf %19, %20 : vector<16x128xf32>
    %c0_18 = arith.constant 0 : index
    %c0_19 = arith.constant 0 : index
    %22 = vector.load %arg8[%c0_18, %c0_19] : memref<16x128xf32, #tpu.memory_space<vmem>>, vector<16x128xf32>
    tpu.vector_store %arg8[%c0_18, %c0_19], %21 {strides = array<i32>} : memref<16x128xf32, #tpu.memory_space<vmem>>, vector<16x128xf32>,
    return
  }
  func.func @transform_0(%arg0: i32) -> (i32, i32) {
    %c0_i32 = arith.constant 0 : i32
    %c0_i32_0 = arith.constant 0 : i32
    return %arg0, %c0_i32 : i32, i32
  }
  func.func @transform_1(%arg0: i32) -> (i32, i32) {
    %c0_i32 = arith.constant 0 : i32
    %c0_i32_0 = arith.constant 0 : i32
    %c0_i32_1 = arith.constant 0 : i32
    return %c0_i32, %c0_i32_0 : i32, i32
  }
  func.func @transform_2(%arg0: i32) -> (i32, i32) {
    %c0_i32 = arith.constant 0 : i32
    %c0_i32_0 = arith.constant 0 : i32
    %c0_i32_1 = arith.constant 0 : i32
    return %c0_i32, %c0_i32_0 : i32, i32
  }
  func.func @transform_3(%arg0: i32) -> (i32, i32) {
    %c0_i32 = arith.constant 0 : i32
    %c0_i32_0 = arith.constant 0 : i32
    %c0_i32_1 = arith.constant 0 : i32
    return %c0_i32, %c0_i32_0 : i32, i32
  }
  func.func @transform_4(%arg0: i32) -> (i32, i32) {
    %c0_i32 = arith.constant 0 : i32
    %c0_i32_0 = arith.constant 0 : i32
    %c0_i32_1 = arith.constant 0 : i32
    return %c0_i32, %c0_i32_0 : i32, i32
  }
  func.func @transform_5(%arg0: i32) -> (i32, i32) {
    %c0_i32 = arith.constant 0 : i32
    %c0_i32_0 = arith.constant 0 : i32
    %c0_i32_1 = arith.constant 0 : i32
    return %c0_i32, %c0_i32_0 : i32, i32
  }
  func.func @transform_6(%arg0: i32) -> (i32, i32) {
    %c0_i32 = arith.constant 0 : i32
    %c0_i32_0 = arith.constant 0 : i32
    %c0_i32_1 = arith.constant 0 : i32
    return %c0_i32, %c0_i32_0 : i32, i32
  }
  func.func @transform_7(%arg0: i32) -> (i32, i32) {
    %c0_i32 = arith.constant 0 : i32
    %c0_i32_0 = arith.constant 0 : i32
    return %arg0, %c0_i32 : i32, i32
  }
}

</mosaic_0001>

<llo_original>
// kernel: tpu_custom_call.1
$region0: #{tpu_custom_call.1}
  #allocation0 [shape = 'u32[]', space=smem, size = 0x4, offset = 0x4, fixed_abs, tag = 'smem constant byte address 0x4 - core index']
  #allocation1 [shape = 'u32[72,128]{1,0:T(1,128)}', space=vmem, size = 0x9000, scoped, tag = 'internal scratch']
  %s0 = inlined_call_operand.vmem [shape: f32[64,32], index: 0, kind: input, shape index: {}]
  %s1 = inlined_call_operand.vmem [shape: f32[32,128], index: 1, kind: input, shape index: {}]
  %s2 = inlined_call_operand.vmem [shape: f32[1,128], index: 2, kind: input, shape index: {}]
  %s3 = inlined_call_operand.hbm [shape: f32[128,128], index: 3, kind: input, shape index: {}]
  %s4 = inlined_call_operand.vmem [shape: f32[1,128], index: 4, kind: input, shape index: {}]
  %s5 = inlined_call_operand.hbm [shape: f32[128,128], index: 5, kind: input, shape index: {}]
  %s6 = inlined_call_operand.vmem [shape: f32[1,128], index: 6, kind: input, shape index: {}]
  %s7 = inlined_call_operand.hbm [shape: f32[64,128], index: 7, kind: output, shape index: {}]
  %s8 = sld [smem:[#allocation0]]
  $region69: #{tpu_custom_call.1} parent=0
    _
  %s10 = ssub.s32 1, %s8
  %s11 = scalar_select 0, %s10, %s8
  $region1: #{tpu_custom_call.1} parent=0
    #allocation2 [shape = 'u8[65536]{0}', space=vmem, size = 0x10000, scoped, tag = 'input window, operand 3, single buffered']
    #allocation3 [shape = 's32[2]{0}', space=sflag, size = 0x8, scoped, tag = 'scoped memory for tpu_custom_call.1']
    #allocation4 [shape = 's32[2]{0}', space=sflag, size = 0x8, scoped, tag = 'scoped memory for tpu_custom_call.1']
    #allocation5 [shape = 'u8[65536]{0}', space=vmem, size = 0x10000, scoped, tag = 'input window, operand 5, single buffered']
    #allocation6 [shape = 's32[1]{0}', space=sflag, size = 0x4, scoped, tag = 'scoped memory for tpu_custom_call.1']
    #allocation7 [shape = 'u8[16384]{0}', space=vmem, size = 0x4000, scoped, tag = 'output window, operand 0']
    %12 = vsyncpa [#allocation3], 0
    %13 = vsyncpa [#allocation6], 0
    %14 = vsyncpa [#allocation4], 0
    %s15 = scalar_lea.sflag [#allocation4], 1
    %16 = vsyncpa %s15, 0
    loop: start=0, step=1, limit=6
    $region2: #{tpu_custom_call.1} parent=1 // loop_pre_header
      _
    $region3: #{tpu_custom_call.1} parent=1 // loop_header
      %s18 = sphi 0, %s22
      %p19 = scmp.ge.s32.totalorder %s18, 6
      %s28 = sphi 0, %s30
      %s31 = sphi 0, %s28
      %s32 = sphi 0, %s31
      %s48 = sphi 0, %s32
      %s52 = sphi 0, %s52
      %s54 = sphi 0, %s52
      %s55 = sphi 0, %s54
      %s69 = sphi 0, %s55
      %s73 = sphi 0, %s73
      %s75 = sphi 0, %s73
      %s76 = sphi 0, %s75
      %s90 = sphi 0, %s76
      %s94 = sphi 0, %s94
      %s96 = sphi 0, %s94
      %s97 = sphi 0, %s96
      %s111 = sphi 0, %s97
      %s115 = sphi 0, %s115
      %s117 = sphi 0, %s115
      %s118 = sphi 0, %s117
      %s132 = sphi 0, %s118
      %s136 = sphi 0, %s136
      %s138 = sphi 0, %s136
      %s139 = sphi 0, %s138
      %s153 = sphi 0, %s139
      %s157 = sphi 0, %s157
      %s159 = sphi 0, %s157
      %s160 = sphi 0, %s159
      %s174 = sphi 0, %s160
      %s180 = sphi 0, %s182
      %s183 = sphi 0, %s180
      %s184 = sphi 0, %s183
      %s200 = sphi 0, %s184
    $region4: #{tpu_custom_call.1} parent=1 // loop_header_branch
      %21 = sbr.rel (%p19) target = $region8
    $region5: #{tpu_custom_call.1} parent=1 // loop_body
      %s23 = ssub.s32 %s18, 1
      %s24 = ssub.s32 %s18, 2
      %s25 = sadd.s32 %s18, 1
      %s26 = ssub.s32 %s18, %s25
      %p27 = scmp.eq.s32.totalorder %s26, 0
      %s29 = sadd.s32 %s28, 1
      %s30 = scalar_select %p27, %s28, %s29
      %p33 = pneg %p27
      %p34 = scmp.eq.s32.totalorder %s18, 3
      %p35 = por %p33, %p34
      %p36 = scmp.ne.s32.totalorder %s28, %s31
      %p37 = scmp.eq.s32.totalorder %s18, 0
      %p38 = por %p36, %p37
      %p39 = scmp.ne.s32.totalorder %s28, %s31
      %p40 = scmp.eq.s32.totalorder %s23, 3
      %p41 = por %p39, %p40
      %p42 = scmp.ne.s32.totalorder %s31, %s32
      %p43 = scmp.eq.s32.totalorder %s23, 0
      %p44 = por %p42, %p43
      %p45 = scmp.ne.s32.totalorder %s31, %s32
      %p46 = scmp.eq.s32.totalorder %s24, 3
      %p47 = por %p45, %p46
      %p49 = scmp.ne.s32.totalorder %s32, %s48
      %p50 = scmp.eq.s32.totalorder %s24, 0
      %p51 = por %p49, %p50
      %s53 = sadd.s32 %s52, 1
      %p56 = scmp.eq.s32.totalorder %s18, 3
      %p57 = scmp.ne.s32.totalorder %s52, %s54
      %p58 = scmp.eq.s32.totalorder %s18, 0
      %p59 = por %p57, %p58
      %p60 = scmp.ne.s32.totalorder %s52, %s54
      %p61 = scmp.eq.s32.totalorder %s23, 3
      %p62 = por %p60, %p61
      %p63 = scmp.ne.s32.totalorder %s54, %s55
      %p64 = scmp.eq.s32.totalorder %s23, 0
      %p65 = por %p63, %p64
      %p66 = scmp.ne.s32.totalorder %s54, %s55
      %p67 = scmp.eq.s32.totalorder %s24, 3
      %p68 = por %p66, %p67
      %p70 = scmp.ne.s32.totalorder %s55, %s69
      %p71 = scmp.eq.s32.totalorder %s24, 0
      %p72 = por %p70, %p71
      %s74 = sadd.s32 %s73, 1
      %p77 = scmp.eq.s32.totalorder %s18, 3
      %p78 = scmp.ne.s32.totalorder %s73, %s75
      %p79 = scmp.eq.s32.totalorder %s18, 0
      %p80 = por %p78, %p79
      %p81 = scmp.ne.s32.totalorder %s73, %s75
      %p82 = scmp.eq.s32.totalorder %s23, 3
      %p83 = por %p81, %p82
      %p84 = scmp.ne.s32.totalorder %s75, %s76
      %p85 = scmp.eq.s32.totalorder %s23, 0
      %p86 = por %p84, %p85
      %p87 = scmp.ne.s32.totalorder %s75, %s76
      %p88 = scmp.eq.s32.totalorder %s24, 3
      %p89 = por %p87, %p88
      %p91 = scmp.ne.s32.totalorder %s76, %s90
      %p92 = scmp.eq.s32.totalorder %s24, 0
      %p93 = por %p91, %p92
      %s95 = sadd.s32 %s94, 1
      %p98 = scmp.eq.s32.totalorder %s18, 3
      %p99 = scmp.ne.s32.totalorder %s94, %s96
      %p100 = scmp.eq.s32.totalorder %s18, 0
      %p101 = por %p99, %p100
      %p102 = scmp.ne.s32.totalorder %s94, %s96
      %p103 = scmp.eq.s32.totalorder %s23, 3
      %p104 = por %p102, %p103
      %p105 = scmp.ne.s32.totalorder %s96, %s97
      %p106 = scmp.eq.s32.totalorder %s23, 0
      %p107 = por %p105, %p106
      %p108 = scmp.ne.s32.totalorder %s96, %s97
      %p109 = scmp.eq.s32.totalorder %s24, 3
      %p110 = por %p108, %p109
      %p112 = scmp.ne.s32.totalorder %s97, %s111
      %p113 = scmp.eq.s32.totalorder %s24, 0
      %p114 = por %p112, %p113
      %s116 = sadd.s32 %s115, 1
      %p119 = scmp.eq.s32.totalorder %s18, 3
      %p120 = scmp.ne.s32.totalorder %s115, %s117
      %p121 = scmp.eq.s32.totalorder %s18, 0
      %p122 = por %p120, %p121
      %p123 = scmp.ne.s32.totalorder %s115, %s117
      %p124 = scmp.eq.s32.totalorder %s23, 3
      %p125 = por %p123, %p124
      %p126 = scmp.ne.s32.totalorder %s117, %s118
      %p127 = scmp.eq.s32.totalorder %s23, 0
      %p128 = por %p126, %p127
      %p129 = scmp.ne.s32.totalorder %s117, %s118
      %p130 = scmp.eq.s32.totalorder %s24, 3
      %p131 = por %p129, %p130
      %p133 = scmp.ne.s32.totalorder %s118, %s132
      %p134 = scmp.eq.s32.totalorder %s24, 0
      %p135 = por %p133, %p134
      %s137 = sadd.s32 %s136, 1
      %p140 = scmp.eq.s32.totalorder %s18, 3
      %p141 = scmp.ne.s32.totalorder %s136, %s138
      %p142 = scmp.eq.s32.totalorder %s18, 0
      %p143 = por %p141, %p142
      %p144 = scmp.ne.s32.totalorder %s136, %s138
      %p145 = scmp.eq.s32.totalorder %s23, 3
      %p146 = por %p144, %p145
      %p147 = scmp.ne.s32.totalorder %s138, %s139
      %p148 = scmp.eq.s32.totalorder %s23, 0
      %p149 = por %p147, %p148
      %p150 = scmp.ne.s32.totalorder %s138, %s139
      %p151 = scmp.eq.s32.totalorder %s24, 3
      %p152 = por %p150, %p151
      %p154 = scmp.ne.s32.totalorder %s139, %s153
      %p155 = scmp.eq.s32.totalorder %s24, 0
      %p156 = por %p154, %p155
      %s158 = sadd.s32 %s157, 1
      %p161 = scmp.eq.s32.totalorder %s18, 3
      %p162 = scmp.ne.s32.totalorder %s157, %s159
      %p163 = scmp.eq.s32.totalorder %s18, 0
      %p164 = por %p162, %p163
      %p165 = scmp.ne.s32.totalorder %s157, %s159
      %p166 = scmp.eq.s32.totalorder %s23, 3
      %p167 = por %p165, %p166
      %p168 = scmp.ne.s32.totalorder %s159, %s160
      %p169 = scmp.eq.s32.totalorder %s23, 0
      %p170 = por %p168, %p169
      %p171 = scmp.ne.s32.totalorder %s159, %s160
      %p172 = scmp.eq.s32.totalorder %s24, 3
      %p173 = por %p171, %p172
      %p175 = scmp.ne.s32.totalorder %s160, %s174
      %p176 = scmp.eq.s32.totalorder %s24, 0
      %p177 = por %p175, %p176
      %s178 = ssub.s32 %s18, %s25
      %p179 = scmp.eq.s32.totalorder %s178, 0
      %s181 = sadd.s32 %s180, 1
      %s182 = scalar_select %p179, %s180, %s181
      %p185 = pneg %p179
      %p186 = scmp.eq.s32.totalorder %s18, 3
      %p187 = por %p185, %p186
      %p188 = scmp.ne.s32.totalorder %s180, %s183
      %p189 = scmp.eq.s32.totalorder %s18, 0
      %p190 = por %p188, %p189
      %p191 = scmp.ne.s32.totalorder %s180, %s183
      %p192 = scmp.eq.s32.totalorder %s23, 3
      %p193 = por %p191, %p192
      %p194 = scmp.ne.s32.totalorder %s183, %s184
      %p195 = scmp.eq.s32.totalorder %s23, 0
      %p196 = por %p194, %p195
      %p197 = scmp.ne.s32.totalorder %s183, %s184
      %p198 = scmp.eq.s32.totalorder %s24, 3
      %p199 = por %p197, %p198
      %p201 = scmp.ne.s32.totalorder %s184, %s200
      %p202 = scmp.eq.s32.totalorder %s24, 0
      %p203 = por %p201, %p202
      %p204 = scmp.le.s32.totalorder 1, %s18
      %p205 = scmp.lt.s32.totalorder %s18, 5
      %p206 = pnand %p204, %p205
      %p207 = pneg %p206
      // Predicated region
      $region9: #{tpu_custom_call.1} parent=5 // pred_check
        _
      $region10: #{tpu_custom_call.1} parent=5 // pred_check_branch
        %209 = sbr.rel (%p206) target = $region12
      $region11: #{tpu_custom_call.1} parent=5 // pred_region
        %s210 = ssub.s32 %s18, 1
        // Predicated region
        $region13: #{tpu_custom_call.1} parent=11 // pred_check
          %p211 = pneg %p65
        $region14: #{tpu_custom_call.1} parent=11 // pred_check_branch
          %213 = sbr.rel (%p211) target = $region16
        $region15: #{tpu_custom_call.1} parent=11 // pred_region
          _
        $region16: #{tpu_custom_call.1} parent=11 // pred_fallthru
          _
        // Predicated region
        $region17: #{tpu_custom_call.1} parent=11 // pred_check
          %p214 = pneg %p86
        $region18: #{tpu_custom_call.1} parent=11 // pred_check_branch
          %216 = sbr.rel (%p214) target = $region20
        $region19: #{tpu_custom_call.1} parent=11 // pred_region
          _
        $region20: #{tpu_custom_call.1} parent=11 // pred_fallthru
          _
        // Predicated region
        $region21: #{tpu_custom_call.1} parent=11 // pred_check
          %p217 = pneg %p107
        $region22: #{tpu_custom_call.1} parent=11 // pred_check_branch
          %219 = sbr.rel (%p217) target = $region24
        $region23: #{tpu_custom_call.1} parent=11 // pred_region
          %221 = vsyncadd [#allocation3], 0
          %s222 = sshll.u32 %s3, 4
          %s223 = int_to_ptr.hbm [resolvable:$true] %s222
          %s224 = sshll.u32 [#allocation2], 4
          %s225 = int_to_ptr.vmem [resolvable:$true] %s224
          %230 = dma.hbm_to_vmem [thread:$0]  %s223, 2048, %s225, [#allocation3], 128, 128, 8
        $region24: #{tpu_custom_call.1} parent=11 // pred_fallthru
          _
        // Predicated region
        $region25: #{tpu_custom_call.1} parent=11 // pred_check
          %p231 = pneg %p128
        $region26: #{tpu_custom_call.1} parent=11 // pred_check_branch
          %233 = sbr.rel (%p231) target = $region28
        $region27: #{tpu_custom_call.1} parent=11 // pred_region
          _
        $region28: #{tpu_custom_call.1} parent=11 // pred_fallthru
          _
        // Predicated region
        $region29: #{tpu_custom_call.1} parent=11 // pred_check
          %p234 = pneg %p149
        $region30: #{tpu_custom_call.1} parent=11 // pred_check_branch
          %236 = sbr.rel (%p234) target = $region32
        $region31: #{tpu_custom_call.1} parent=11 // pred_region
          %238 = vsyncadd [#allocation6], 0
          %s239 = sshll.u32 %s5, 4
          %s240 = int_to_ptr.hbm [resolvable:$true] %s239
          %s241 = sshll.u32 [#allocation5], 4
          %s242 = int_to_ptr.vmem [resolvable:$true] %s241
          %247 = dma.hbm_to_vmem [thread:$0]  %s240, 2048, %s242, [#allocation6], 128, 128, 8
        $region32: #{tpu_custom_call.1} parent=11 // pred_fallthru
          _
        // Predicated region
        $region33: #{tpu_custom_call.1} parent=11 // pred_check
          %p248 = pneg %p170
        $region34: #{tpu_custom_call.1} parent=11 // pred_check_branch
          %250 = sbr.rel (%p248) target = $region36
        $region35: #{tpu_custom_call.1} parent=11 // pred_region
          _
        $region36: #{tpu_custom_call.1} parent=11 // pred_fallthru
          _
      $region12: #{tpu_custom_call.1} parent=5 // pred_fallthru
        _
      %p251 = scmp.lt.s32.totalorder %s18, 4
      // Predicated region
      $region37: #{tpu_custom_call.1} parent=5 // pred_check
        %p252 = pneg %p251
      $region38: #{tpu_custom_call.1} parent=5 // pred_check_branch
        %254 = sbr.rel (%p252) target = $region40
      $region39: #{tpu_custom_call.1} parent=5 // pred_region
        // Predicated region
        $region41: #{tpu_custom_call.1} parent=39 // pred_check
          %p255 = pneg %p38
        $region42: #{tpu_custom_call.1} parent=39 // pred_check_branch
          %257 = sbr.rel (%p255) target = $region44
        $region43: #{tpu_custom_call.1} parent=39 // pred_region
          %s258 = smul.u32 2, %s18
          %p259 = scmp.lt.s32.totalorder %s258, 7
          %s260 = scalar_select %p259, %s258, 7
          %s261 = smul.addr %s260, 8
          %s262 = scalar_lea.vmem %s0, %s261
          %s263 = smul.u32 2, %s18
        $region44: #{tpu_custom_call.1} parent=39 // pred_fallthru
          _
      $region40: #{tpu_custom_call.1} parent=5 // pred_fallthru
        _
      %p264 = scmp.le.s32.totalorder 1, %s18
      %p265 = scmp.lt.s32.totalorder %s18, 5
      %p266 = pnand %p264, %p265
      %p267 = pneg %p266
      // Predicated region
      $region45: #{tpu_custom_call.1} parent=5 // pred_check
        _
      $region46: #{tpu_custom_call.1} parent=5 // pred_check_branch
        %269 = sbr.rel (%p266) target = $region48
      $region47: #{tpu_custom_call.1} parent=5 // pred_region
        %s270 = ssub.s32 %s18, 1
        // Predicated region
        $region49: #{tpu_custom_call.1} parent=47 // pred_check
          %p271 = pneg %p107
        $region50: #{tpu_custom_call.1} parent=47 // pred_check_branch
          %273 = sbr.rel (%p271) target = $region52
        $region51: #{tpu_custom_call.1} parent=47 // pred_region
          %275 = dma.done [#allocation3], 2048
        $region52: #{tpu_custom_call.1} parent=47 // pred_fallthru
          _
        // Predicated region
        $region53: #{tpu_custom_call.1} parent=47 // pred_check
          %p276 = pneg %p149
        $region54: #{tpu_custom_call.1} parent=47 // pred_check_branch
          %278 = sbr.rel (%p276) target = $region56
        $region55: #{tpu_custom_call.1} parent=47 // pred_region
          %280 = dma.done [#allocation6], 2048
        $region56: #{tpu_custom_call.1} parent=47 // pred_fallthru
          _
        %s281 = smul.u32 2, %s23
        %p282 = scmp.lt.s32.totalorder %s281, 7
        %s283 = scalar_select %p282, %s281, 7
        %s284 = smul.addr %s283, 8
        %s285 = scalar_lea.vmem %s0, %s284
        %p286 = pneg %p44
        %p287 = pneg %p41
        %p288 = pneg %p65
        %p289 = pneg %p62
        %p290 = pneg %p86
        %p291 = pneg %p83
        %p292 = pneg %p107
        %p293 = pneg %p104
        %p294 = pneg %p128
        %p295 = pneg %p125
        %p296 = pneg %p149
        %p297 = pneg %p146
        %p298 = pneg %p170
        %p299 = pneg %p167
        %p300 = pneg %p196
        %p301 = pneg %p193
        %s302 = sand.u32 %s183, 1
        %s303 = scalar_lea.sflag [#allocation4], %s302
        %s304 = sand.u32 %s183, 1
        %s305 = smul.addr %s304, 16
        %s306 = scalar_lea.vmem [#allocation7], %s305
        %s307 = smul.u32 2, %s23
        %p308 = scmp.lt.s32.totalorder %s307, 7
        %s309 = scalar_select %p308, %s307, 7
        %s310 = smul.addr %s309, 8
        %s311 = scalar_lea.vmem %s0, %s310
        %s312 = smul.u32 2, %s23
        %s313 = smul.u32 2, %s23
        %v314 = vld [vmem:[%s311] sm:$0xff]
        %v315 = vld [vmem:[%s311 + $0x8] sm:$0xff]
        %v316 = vld [vmem:[%s1] sm:$0xff]
        %v317 = vld [vmem:[%s1 + $0x8] sm:$0xff]
        %v318 = vld [vmem:[%s1 + $0x10] sm:$0xff]
        %v319 = vld [vmem:[%s1 + $0x18] sm:$0xff]
        %v320 = vld [vmem:[%s2] sm:$0x1]
        %v322 = vperm.slane %v320, 0
        %vm324 = vcmask 261120
        %v326 = vsel %vm324, %v314, 0
        %v329 = vsel %vm324, %v315, 0
        %331 = vmatpush.msra.mxu0 0.0
        %332 = vmatpush.msra.mxu0 0.0
        %333 = vmatpush.msra.mxu0 0.0
        %334 = vmatpush.msra.mxu0 0.0
        %335 = vmatpush.msra.mxu0 0.0
        %336 = vmatpush.msra.mxu0 0.0
        %337 = vmatpush.msra.mxu0 0.0
        %338 = vmatpush.msra.mxu0 0.0
        %339 = vmatpush.msra.mxu0 0.0
        %340 = vmatpush.msra.mxu0 0.0
        %341 = vmatpush.msra.mxu0 0.0
        %342 = vmatpush.msra.mxu0 0.0
        %343 = vmatpush.msra.mxu0 %v319
        %344 = vmatpush.msra.mxu0 %v318
        %345 = vmatpush.msra.mxu0 %v317
        %346 = vmatpush.msra.mxu0 %v316
        %347 = vmatmul.f32.gmra.mxu0 %v326
        %v348 = vpop.f32.mrf.mxu0
        %v349 = vadd.f32 %v322, %v348
        %350 = vmatmul.f32.gmra.mxu0 %v329
        %v351 = vpop.f32.mrf.mxu0
        %v352 = vadd.f32 %v322, %v351
        %353 = vdwg.mxu0
        %v354 = vmax.f32 %v349, 0.0
        %v355 = vmax.f32 %v352, 0.0
        %v356 = vld [vmem:[#allocation2] sm:$0xff]
        %v357 = vld [vmem:[#allocation2 + $0x8] sm:$0xff]
        %v358 = vld [vmem:[#allocation2 + $0x10] sm:$0xff]
        %v359 = vld [vmem:[#allocation2 + $0x18] sm:$0xff]
        %v360 = vld [vmem:[#allocation2 + $0x20] sm:$0xff]
        %v361 = vld [vmem:[#allocation2 + $0x28] sm:$0xff]
        %v362 = vld [vmem:[#allocation2 + $0x30] sm:$0xff]
        %v363 = vld [vmem:[#allocation2 + $0x38] sm:$0xff]
        %v364 = vld [vmem:[#allocation2 + $0x40] sm:$0xff]
        %v365 = vld [vmem:[#allocation2 + $0x48] sm:$0xff]
        %v366 = vld [vmem:[#allocation2 + $0x50] sm:$0xff]
        %v367 = vld [vmem:[#allocation2 + $0x58] sm:$0xff]
        %v368 = vld [vmem:[#allocation2 + $0x60] sm:$0xff]
        %v369 = vld [vmem:[#allocation2 + $0x68] sm:$0xff]
        %v370 = vld [vmem:[#allocation2 + $0x70] sm:$0xff]
        %v371 = vld [vmem:[#allocation2 + $0x78] sm:$0xff]
        %v372 = vld [vmem:[%s4] sm:$0x1]
        %v374 = vperm.slane %v372, 0
        %376 = vmatpush.msra.mxu0 %v371
        %377 = vmatpush.msra.mxu0 %v370
        %378 = vmatpush.msra.mxu0 %v369
        %379 = vmatpush.msra.mxu0 %v368
        %380 = vmatpush.msra.mxu0 %v367
        %381 = vmatpush.msra.mxu0 %v366
        %382 = vmatpush.msra.mxu0 %v365
        %383 = vmatpush.msra.mxu0 %v364
        %384 = vmatpush.msra.mxu0 %v363
        %385 = vmatpush.msra.mxu0 %v362
        %386 = vmatpush.msra.mxu0 %v361
        %387 = vmatpush.msra.mxu0 %v360
        %388 = vmatpush.msra.mxu0 %v359
        %389 = vmatpush.msra.mxu0 %v358
        %390 = vmatpush.msra.mxu0 %v357
        %391 = vmatpush.msra.mxu0 %v356
        %392 = vmatmul.f32.gmra.mxu0 %v354
        %v393 = vpop.f32.mrf.mxu0
        %v394 = vadd.f32 %v374, %v393
        %395 = vmatmul.f32.gmra.mxu0 %v355
        %v396 = vpop.f32.mrf.mxu0
        %v397 = vadd.f32 %v374, %v396
        %398 = vdwg.mxu0
        %v399 = vmax.f32 %v394, 0.0
        %v400 = vmax.f32 %v397, 0.0
        %v401 = vld [vmem:[#allocation5] sm:$0xff]
        %v402 = vld [vmem:[#allocation5 + $0x8] sm:$0xff]
        %v403 = vld [vmem:[#allocation5 + $0x10] sm:$0xff]
        %v404 = vld [vmem:[#allocation5 + $0x18] sm:$0xff]
        %v405 = vld [vmem:[#allocation5 + $0x20] sm:$0xff]
        %v406 = vld [vmem:[#allocation5 + $0x28] sm:$0xff]
        %v407 = vld [vmem:[#allocation5 + $0x30] sm:$0xff]
        %v408 = vld [vmem:[#allocation5 + $0x38] sm:$0xff]
        %v409 = vld [vmem:[#allocation5 + $0x40] sm:$0xff]
        %v410 = vld [vmem:[#allocation5 + $0x48] sm:$0xff]
        %v411 = vld [vmem:[#allocation5 + $0x50] sm:$0xff]
        %v412 = vld [vmem:[#allocation5 + $0x58] sm:$0xff]
        %v413 = vld [vmem:[#allocation5 + $0x60] sm:$0xff]
        %v414 = vld [vmem:[#allocation5 + $0x68] sm:$0xff]
        %v415 = vld [vmem:[#allocation5 + $0x70] sm:$0xff]
        %v416 = vld [vmem:[#allocation5 + $0x78] sm:$0xff]
        %v417 = vld [vmem:[%s6] sm:$0x1]
        %v419 = vperm.slane %v417, 0
        %421 = vmatpush.msra.mxu0 %v416
        %422 = vmatpush.msra.mxu0 %v415
        %423 = vmatpush.msra.mxu0 %v414
        %424 = vmatpush.msra.mxu0 %v413
        %425 = vmatpush.msra.mxu0 %v412
        %426 = vmatpush.msra.mxu0 %v411
        %427 = vmatpush.msra.mxu0 %v410
        %428 = vmatpush.msra.mxu0 %v409
        %429 = vmatpush.msra.mxu0 %v408
        %430 = vmatpush.msra.mxu0 %v407
        %431 = vmatpush.msra.mxu0 %v406
        %432 = vmatpush.msra.mxu0 %v405
        %433 = vmatpush.msra.mxu0 %v404
        %434 = vmatpush.msra.mxu0 %v403
        %435 = vmatpush.msra.mxu0 %v402
        %436 = vmatpush.msra.mxu0 %v401
        %437 = vmatmul.f32.gmra.mxu0 %v399
        %v438 = vpop.f32.mrf.mxu0
        %v439 = vadd.f32 %v419, %v438
        %440 = vmatmul.f32.gmra.mxu0 %v400
        %v441 = vpop.f32.mrf.mxu0
        %v442 = vadd.f32 %v419, %v441
        %443 = vdwg.mxu0
        %v444 = vmax.f32 %v439, 0.0
        %v445 = vmax.f32 %v442, 0.0
        %446 = vst [vmem:[%s306] sm:$0xff] %v444
        %447 = vst [vmem:[%s306 + $0x8] sm:$0xff] %v445
        %s448 = sand.u32 %s183, 1
        %s449 = scalar_lea.sflag [#allocation4], %s448
        %s450 = sand.u32 %s183, 1
        %s451 = smul.addr %s450, 16
        %s452 = scalar_lea.vmem [#allocation7], %s451
        // Predicated region
        $region57: #{tpu_custom_call.1} parent=47 // pred_check
          %p453 = pneg %p193
        $region58: #{tpu_custom_call.1} parent=47 // pred_check_branch
          %455 = sbr.rel (%p453) target = $region60
        $region59: #{tpu_custom_call.1} parent=47 // pred_region
          %s456 = smul.u32 2, %s23
          %458 = vsyncadd %s449, 0
          %s459 = smul.addr %s456, 8
          %s460 = scalar_lea.hbm %s7, %s459
          %s461 = sshll.u32 %s452, 4
          %s462 = int_to_ptr.vmem [resolvable:$true] %s461
          %s463 = sshll.u32 %s460, 4
          %s464 = int_to_ptr.hbm [resolvable:$true] %s463
          %469 = dma.vmem_to_hbm [thread:$0]  %s462, 256, %s464, %s449, 128, 128, 8
        $region60: #{tpu_custom_call.1} parent=47 // pred_fallthru
          _
      $region48: #{tpu_custom_call.1} parent=5 // pred_fallthru
        _
      %p470 = scmp.le.s32.totalorder 2, %s18
      // Predicated region
      $region61: #{tpu_custom_call.1} parent=5 // pred_check
        %p471 = pneg %p470
      $region62: #{tpu_custom_call.1} parent=5 // pred_check_branch
        %473 = sbr.rel (%p471) target = $region64
      $region63: #{tpu_custom_call.1} parent=5 // pred_region
        %s474 = ssub.s32 %s18, 2
        // Predicated region
        $region65: #{tpu_custom_call.1} parent=63 // pred_check
          %p475 = pneg %p199
        $region66: #{tpu_custom_call.1} parent=63 // pred_check_branch
          %477 = sbr.rel (%p475) target = $region68
        $region67: #{tpu_custom_call.1} parent=63 // pred_region
          %s478 = sand.u32 %s184, 1
          %s479 = scalar_lea.sflag [#allocation4], %s478
          %s480 = sand.u32 %s184, 1
          %s481 = smul.addr %s480, 16
          %s482 = scalar_lea.vmem [#allocation7], %s481
          %484 = dma.done %s479, 256
        $region68: #{tpu_custom_call.1} parent=63 // pred_fallthru
          _
      $region64: #{tpu_custom_call.1} parent=5 // pred_fallthru
        _
    $region6: #{tpu_custom_call.1} parent=1 // loop_footer
      %s22 = sadd.s32 1, %s18
    $region7: #{tpu_custom_call.1} parent=1 // loop_footer_branch
      %17 = sbr.rel target = $region3
    $region8: #{tpu_custom_call.1} parent=1 // loop_exit
      _
    %485 = vsyncpa [#allocation3], 1
    %s486 = scalar_lea.sflag [#allocation3], 1
    %487 = vsyncpa %s486, 1
    %488 = vsyncpa [#allocation6], 1
    %489 = vsyncpa [#allocation4], 1
    %s490 = scalar_lea.sflag [#allocation4], 1
    %491 = vsyncpa %s490, 1

</llo_original>
